<compile_context>
chip_gen: v7x
topology: tpu7x:2x2x1
jax: 0.10.0
libtpu: 0.0.40
codegen_flags: <defaults>
</compile_context>

<pallas_src>
import math
import functools

import jax
import jax.numpy as jnp
from jax.experimental import pallas as pl
from jax.experimental.pallas import tpu as pltpu

EPS = 1e-10


def _round_up(x, m):
    return ((x + m - 1) // m) * m


def _arcface_kernel(labels_ref, cos_ref, out_ref, *,
                    scale_cos_m, scale_sin_m, min_cos, scale_margin_am,
                    scale, tile_n):
    j = pl.program_id(1)

    c = jnp.clip(cos_ref[...].astype(jnp.float32), -1.0, 1.0)
    s = jnp.sqrt(1.0 - c * c + EPS)

    # scale folded into both branches (saves the final full-tile multiply)
    cs = c * scale
    cm = c * scale_cos_m - s * scale_sin_m
    cm = jnp.where(c > min_cos, cm, cs - scale_margin_am)

    # labels == -1 never matches col (col >= 0), so no extra validity check.
    labels = labels_ref[...]                                     # (tile_m, 1) int32
    col = jax.lax.broadcasted_iota(jnp.int32, c.shape, 1) + j * tile_n
    is_target = col == labels

    out_ref[...] = jnp.where(is_target, cm, cs).astype(out_ref.dtype)


def arcface_forward(cos_theta, labels, *,
                    margin_arc=0.5, margin_am=0.0, scale=64.0,
                    tile_m=None, tile_n=None, donate_input=False):
    B, C = cos_theta.shape
    dtype = cos_theta.dtype

    # Sublane packing: bf16 wants 16-row multiples, f32 wants 8.
    row_mult = 16 if dtype == jnp.bfloat16 else 8

    if tile_m is None:
        tile_m = min(_round_up(B, row_mult), 256)
    if tile_n is None:
        # Lane-dense blocks: whole class axis when small, else 1024-wide strips.
        # 256x1024 f32 = 1 MiB/block -> ~4 MiB double-buffered (in+out); fits the
        # v5e ~16 MiB and v7x ~32 MiB scoped-VMEM defaults with lots of headroom.
        tile_n = _round_up(C, 128) if C <= 2048 else 1024

    Bp = _round_up(B, tile_m)
    Cp = _round_up(C, tile_n)

    labels2d = labels.astype(jnp.int32).reshape(B, 1)
    padded = (Bp != B) or (Cp != C)
    if padded:
        cos_in = jnp.pad(cos_theta, ((0, Bp - B), (0, Cp - C)))
        labels_in = jnp.pad(labels2d, ((0, Bp - B), (0, 0)), constant_values=-1)
    else:
        cos_in = cos_theta
        labels_in = labels2d

    kern = functools.partial(
        _arcface_kernel,
        scale_cos_m=scale * math.cos(margin_arc),
        scale_sin_m=scale * math.sin(margin_arc),
        min_cos=math.cos(math.pi - margin_arc),
        scale_margin_am=scale * margin_am,
        scale=scale,
        tile_n=tile_n,
    )

    # In-place write of the logits when the caller donates cos_theta (index 1
    # of the pallas_call operands) and no padding is required.
    aliases = {1: 0} if (donate_input and not padded) else {}

    out = pl.pallas_call(
        kern,
        out_shape=jax.ShapeDtypeStruct((Bp, Cp), dtype),
        grid_spec=pltpu.PrefetchScalarGridSpec(
            num_scalar_prefetch=0,
            grid=(Bp // tile_m, Cp // tile_n),
            in_specs=[
                pl.BlockSpec((tile_m, 1), lambda i, j: (i, 0)),        # per-row labels
                pl.BlockSpec((tile_m, tile_n), lambda i, j: (i, j)),   # cos_theta tile
            ],
            out_specs=pl.BlockSpec((tile_m, tile_n), lambda i, j: (i, j)),
        ),
        compiler_params=pltpu.CompilerParams(
            dimension_semantics=("parallel", "parallel")),
        input_output_aliases=aliases,
    )(labels_in, cos_in)

    if padded:
        out = out[:B, :C]
    return out


def arcface_reference(cos_theta, labels, *,
                      margin_arc=0.5, margin_am=0.0, scale=64.0):
    c = jnp.clip(cos_theta.astype(jnp.float32), -1.0, 1.0)
    s = jnp.sqrt(1.0 - c * c + EPS)
    cm = c * math.cos(margin_arc) - s * math.sin(margin_arc)
    cm = jnp.where(c > math.cos(math.pi - margin_arc), cm, c - margin_am)
    col = jnp.arange(c.shape[1])[None, :]
    lab = labels.astype(jnp.int32)[:, None]
    is_target = (col == lab) & (lab != -1)
    return (jnp.where(is_target, cm, c) * scale).astype(cos_theta.dtype)


if __name__ == "__main__":
    key = jax.random.PRNGKey(0)
    k1, k2, k3, k4 = jax.random.split(key, 4)

    # --- aligned case --------------------------------------------------------
    B, C = 8, 256  # batch x num_classes
    # cos_theta values in roughly [-1.2, 1.2] to exercise the clamp
    cos_theta = jax.random.uniform(k1, (B, C), jnp.float32, minval=-1.2, maxval=1.2)
    labels = jax.random.randint(k2, (B,), 0, C, dtype=jnp.int32)
    labels = labels.at[3].set(-1)  # one invalid label row

    out = arcface_forward(cos_theta, labels)
    out = jax.block_until_ready(out)
    ref = arcface_reference(cos_theta, labels)
    assert out.shape == (B, C)
    assert jnp.allclose(out, ref, atol=1e-4, rtol=1e-5)

    # --- ragged case (exercises padding path) --------------------------------
    B2, C2 = 6, 200
    cos2 = jax.random.uniform(k3, (B2, C2), jnp.float32, minval=-1.2, maxval=1.2)
    lab2 = jax.random.randint(k4, (B2,), 0, C2, dtype=jnp.int32)
    lab2 = lab2.at[0].set(-1)

    out2 = jax.block_until_ready(arcface_forward(cos2, lab2))
    ref2 = arcface_reference(cos2, lab2)
    assert out2.shape == (B2, C2)
    assert jnp.allclose(out2, ref2, atol=1e-4, rtol=1e-5)

    print("KERNEL_OK")
</pallas_src>

<mosaic_0001>
module attributes {stable_mosaic.version = 11 : i64} {
  func.func @_arcface_kernel(%arg0: i32, %arg1: i32, %arg2: memref<8x1xi32, #tpu.memory_space<vmem>>, %arg3: memref<8x256xf32, #tpu.memory_space<vmem>>, %arg4: memref<8x256xf32, #tpu.memory_space<vmem>>) attributes {dimension_semantics = [#tpu.dimension_semantics<parallel>, #tpu.dimension_semantics<parallel>], iteration_bounds = array<i64: 1, 1>, scalar_prefetch = 0 : i64, scratch_operands = 0 : i64, tpu.core_type = #tpu.core_type<tc>, window_params = [{transform_indices = @transform_0, window_bounds = array<i64: 8, 1>}, {transform_indices = @transform_1, window_bounds = array<i64: 8, 256>}, {transform_indices = @transform_2, window_bounds = array<i64: 8, 256>}]} {
    %c0 = arith.constant 0 : index
    %c0_0 = arith.constant 0 : index
    %0 = vector.load %arg3[%c0, %c0_0] : memref<8x256xf32, #tpu.memory_space<vmem>>, vector<8x256xf32>
    %cst = arith.constant -1.000000e+00 : f32
    %cst_1 = arith.constant 1.000000e+00 : f32
    %1 = vector.broadcast %cst : f32 to vector<8x256xf32>
    %2 = arith.maximumf %1, %0 : vector<8x256xf32>
    %3 = vector.broadcast %cst_1 : f32 to vector<8x256xf32>
    %4 = arith.minimumf %3, %2 : vector<8x256xf32>
    %5 = arith.mulf %4, %4 : vector<8x256xf32>
    %cst_2 = arith.constant 1.000000e+00 : f32
    %6 = vector.broadcast %cst_2 : f32 to vector<8x256xf32>
    %7 = arith.subf %6, %5 : vector<8x256xf32>
    %cst_3 = arith.constant 1.000000e-10 : f32
    %8 = vector.broadcast %cst_3 : f32 to vector<8x256xf32>
    %9 = arith.addf %7, %8 : vector<8x256xf32>
    %10 = math.sqrt %9 : vector<8x256xf32>
    %cst_4 = arith.constant 6.400000e+01 : f32
    %11 = vector.broadcast %cst_4 : f32 to vector<8x256xf32>
    %12 = arith.mulf %4, %11 : vector<8x256xf32>
    %cst_5 = arith.constant 56.1652832 : f32
    %13 = vector.broadcast %cst_5 : f32 to vector<8x256xf32>
    %14 = arith.mulf %4, %13 : vector<8x256xf32>
    %cst_6 = arith.constant 30.6832352 : f32
    %15 = vector.broadcast %cst_6 : f32 to vector<8x256xf32>
    %16 = arith.mulf %10, %15 : vector<8x256xf32>
    %17 = arith.subf %14, %16 : vector<8x256xf32>
    %cst_7 = arith.constant -0.87758255 : f32
    %18 = vector.broadcast %cst_7 : f32 to vector<8x256xf32>
    %19 = arith.cmpf ogt, %4, %18 : vector<8x256xf32>
    %cst_8 = arith.constant 0.000000e+00 : f32
    %20 = vector.broadcast %cst_8 : f32 to vector<8x256xf32>
    %21 = arith.subf %12, %20 : vector<8x256xf32>
    %22 = arith.select %19, %17, %21 : vector<8x256xi1>, vector<8x256xf32>
    %c0_9 = arith.constant 0 : index
    %c0_10 = arith.constant 0 : index
    %23 = vector.load %arg2[%c0_9, %c0_10] : memref<8x1xi32, #tpu.memory_space<vmem>>, vector<8x1xi32>
    %24 = tpu.iota {dimensions = array<i32: 1>} : vector<8x256xi32>
    %c256_i32 = arith.constant 256 : i32
    %25 = arith.muli %arg1, %c256_i32 : i32
    %26 = vector.broadcast %25 : i32 to vector<8x256xi32>
    %27 = arith.addi %24, %26 : vector<8x256xi32>
    %28 = vector.broadcast %23 : vector<8x1xi32> to vector<8x256xi32>
    %29 = arith.cmpi eq, %27, %28 : vector<8x256xi32>
    %30 = arith.select %29, %22, %12 : vector<8x256xi1>, vector<8x256xf32>
    %c0_11 = arith.constant 0 : index
    %c0_12 = arith.constant 0 : index
    %31 = vector.load %arg4[%c0_11, %c0_12] : memref<8x256xf32, #tpu.memory_space<vmem>>, vector<8x256xf32>
    tpu.vector_store %arg4[%c0_11, %c0_12], %30 {strides = array<i32>} : memref<8x256xf32, #tpu.memory_space<vmem>>, vector<8x256xf32>,
    return
  }
  func.func @transform_0(%arg0: i32, %arg1: i32) -> (i32, i32) {
    %c0_i32 = arith.constant 0 : i32
    %c0_i32_0 = arith.constant 0 : i32
    return %arg0, %c0_i32 : i32, i32
  }
  func.func @transform_1(%arg0: i32, %arg1: i32) -> (i32, i32) {
    %c0_i32 = arith.constant 0 : i32
    return %arg0, %arg1 : i32, i32
  }
  func.func @transform_2(%arg0: i32, %arg1: i32) -> (i32, i32) {
    %c0_i32 = arith.constant 0 : i32
    return %arg0, %arg1 : i32, i32
  }
}

</mosaic_0001>

<llo_original>
// kernel: tpu_custom_call.1
$region0: #{tpu_custom_call.1}
  #allocation0 [shape = 'u32[]', space=smem, size = 0x4, offset = 0x4, fixed_abs, tag = 'smem constant byte address 0x4 - core index']
  #allocation1 [shape = 'u32[144,128]{1,0:T(1,128)}', space=vmem, size = 0x12000, scoped, tag = 'internal scratch']
  %s0 = inlined_call_operand.vmem [shape: s32[8,1], index: 0, kind: input, shape index: {}]
  %s1 = inlined_call_operand.hbm [shape: f32[8,256], index: 1, kind: input, shape index: {}]
  %s2 = inlined_call_operand.hbm [shape: f32[8,256], index: 2, kind: output, shape index: {}]
  %s3 = sld [smem:[#allocation0]]
  $region22: #{tpu_custom_call.1} parent=0
    _
  %s5 = ssub.s32 1, %s3
  %s6 = scalar_select 0, %s5, %s3
  $region1: #{tpu_custom_call.1} parent=0
    #allocation2 [shape = 'u8[8192]{0}', space=vmem, size = 0x2000, scoped, tag = 'input window, operand 1, single buffered']
    #allocation3 [shape = 's32[1]{0}', space=sflag, size = 0x4, scoped, tag = 'scoped memory for tpu_custom_call.1']
    #allocation4 [shape = 's32[1]{0}', space=sflag, size = 0x4, scoped, tag = 'scoped memory for tpu_custom_call.1']
    #allocation5 [shape = 'u8[8192]{0}', space=vmem, size = 0x2000, scoped, tag = 'output window, operand 0, single buffered']
    %7 = vsyncpa [#allocation3], 0
    %8 = vsyncpa [#allocation4], 0
    // Predicated region
    $region2: #{tpu_custom_call.1} parent=1 // pred_check
      _
    $region3: #{tpu_custom_call.1} parent=1 // pred_check_branch
      %10 = sbr.rel (0) target = $region5
    $region4: #{tpu_custom_call.1} parent=1 // pred_region
      _
    $region5: #{tpu_custom_call.1} parent=1 // pred_fallthru
      _
    // Predicated region
    $region6: #{tpu_custom_call.1} parent=1 // pred_check
      _
    $region7: #{tpu_custom_call.1} parent=1 // pred_check_branch
      %12 = sbr.rel (0) target = $region9
    $region8: #{tpu_custom_call.1} parent=1 // pred_region
      %s14 = ssub.s32 256, 256
      %15 = vsyncadd [#allocation3], %s14
      %s17 = sshll.u32 [#allocation2], 4
      %s18 = int_to_ptr.vmem [resolvable:$true] %s17
      %20 = dma.hbm_to_vmem [thread:$0]  %s1, 256, %s18, [#allocation3]
    $region9: #{tpu_custom_call.1} parent=1 // pred_fallthru
      _
    // Predicated region
    $region10: #{tpu_custom_call.1} parent=1 // pred_check
      _
    $region11: #{tpu_custom_call.1} parent=1 // pred_check_branch
      %22 = sbr.rel (0) target = $region13
    $region12: #{tpu_custom_call.1} parent=1 // pred_region
      %23 = dma.done [#allocation3], 256
    $region13: #{tpu_custom_call.1} parent=1 // pred_fallthru
      _
    %v24 = vld [vmem:[#allocation2] sm:$0xff]
    %v25 = vld [vmem:[#allocation2 + $0x8] sm:$0xff]
    %v26 = vmax.f32 %v24, -1.0
    %v27 = vmax.f32 %v25, -1.0
    %v28 = vmin.f32 %v26, 1.0
    %v29 = vmin.f32 %v27, 1.0
    %v30 = vmul.f32 %v28, %v28
    %v31 = vmul.f32 %v29, %v29
    %v32 = vsub.f32 1.0, %v30
    %v33 = vsub.f32 1.0, %v31
    %v34 = vadd.f32 %v32, 1e-10
    %v35 = vadd.f32 %v33, 1e-10
    %v36 = vrsqrt.pop %v34
    %v37 = vmul.f32 %v34, %v36
    %vm38 = vcmp.eq.f32.partialorder %v34, inf
    %v39 = vsel %vm38, %v34, %v37
    %vm40 = vcmp.eq.f32.partialorder %v34, 0.0
    %v41 = vand.u32 %v34, 2147483648
    %v42 = vsel %vm40, %v41, %v39
    %v43 = vrsqrt.pop %v35
    %v44 = vmul.f32 %v35, %v43
    %vm45 = vcmp.eq.f32.partialorder %v35, inf
    %v46 = vsel %vm45, %v35, %v44
    %vm47 = vcmp.eq.f32.partialorder %v35, 0.0
    %v48 = vand.u32 %v35, 2147483648
    %v49 = vsel %vm47, %v48, %v46
    %v50 = vmul.f32 %v28, 64.0
    %v51 = vmul.f32 %v29, 64.0
    %v52 = vmul.f32 %v28, 56.165283
    %v53 = vmul.f32 %v29, 56.165283
    %v54 = vmul.f32 %v42, 30.683235
    %v55 = vmul.f32 %v49, 30.683235
    %v56 = vsub.f32 %v52, %v54
    %v57 = vsub.f32 %v53, %v55
    %vm58 = vcmp.gt.f32.partialorder %v28, -0.87758255
    %vm59 = vcmp.gt.f32.partialorder %v29, -0.87758255
    %v60 = vsel %vm58, %v56, %v50
    %v61 = vsel %vm59, %v57, %v51
    %v62 = vld [vmem:[%s0] sm:$0xff]
    %v63 = vlaneseq
    %v64 = vand.u32 %v63, 127
    %v65 = vadd.s32 %v64, 128
    %s66 = smul.u32 0, 256
    %v67 = vstv %s66
    %v68 = vadd.s32 %v64, %v67
    %v69 = vadd.s32 %v65, %v67
    %70 = vset.pattern.permute.xlu0 0
    %71 = vperm.xlu0 %70, %v62
    %v72 = vpop.permute.xlu0 %71
    %vm73 = vcmp.eq.s32.totalorder %v68, %v72
    %vm74 = vcmp.eq.s32.totalorder %v69, %v72
    %v75 = vsel %vm73, %v60, %v50
    %v76 = vsel %vm74, %v61, %v51
    %77 = vst [vmem:[#allocation5] sm:$0xff] %v75
    %78 = vst [vmem:[#allocation5 + $0x8] sm:$0xff] %v76
    // Predicated region
    $region14: #{tpu_custom_call.1} parent=1 // pred_check
      _
    $region15: #{tpu_custom_call.1} parent=1 // pred_check_branch
      %80 = sbr.rel (0) target = $region17
    $region16: #{tpu_custom_call.1} parent=1 // pred_region
      %s82 = ssub.s32 256, 256
      %83 = vsyncadd [#allocation4], %s82
      %s85 = sshll.u32 [#allocation5], 4
      %s86 = int_to_ptr.vmem [resolvable:$true] %s85
      %88 = dma.vmem_to_hbm [thread:$0]  %s86, 256, %s2, [#allocation4]
    $region17: #{tpu_custom_call.1} parent=1 // pred_fallthru
      _
    // Predicated region
    $region18: #{tpu_custom_call.1} parent=1 // pred_check
      _
    $region19: #{tpu_custom_call.1} parent=1 // pred_check_branch
      %90 = sbr.rel (0) target = $region21
    $region20: #{tpu_custom_call.1} parent=1 // pred_region
      %91 = dma.done [#allocation4], 256
    $region21: #{tpu_custom_call.1} parent=1 // pred_fallthru
      _
    %92 = vsyncpa [#allocation3], 1
    %93 = vsyncpa [#allocation4], 1

</llo_original>
